<compile_context>
chip_gen: v5e
topology: v5e:2x2
jax: 0.10.0
libtpu: 0.0.40
codegen_flags: <defaults>
</compile_context>

<pallas_src>
import functools

import jax
import jax.numpy as jnp
from jax.experimental import pallas as pl
from jax.experimental.pallas import tpu as pltpu


def _policy_head_kernel(x_ref, w_ref, b_ref, out_ref):
    # Linear + Tanh: MXU matmul with f32 accumulation, VPU add, EUP tanh.
    z = jnp.dot(x_ref[...], w_ref[...], preferred_element_type=jnp.float32)
    out_ref[...] = jnp.tanh(z + b_ref[...]).astype(out_ref.dtype)


def _round_up(x, m):
    return ((x + m - 1) // m) * m


def _vmem_budget_bytes():
    """Usable VMEM budget for this kernel's working set (per generation)."""
    try:
        cap = int(pltpu.get_tpu_info().vmem_capacity_bytes)
    except Exception:
        cap = 64 << 20  # conservative: v7x physical VMEM
    return max((cap * 3) // 4, 16 << 20)   # ~48 MiB on v7x, ~96 MiB on v5e/v6e


def _choose_batch_tile(B, I, A, budget):
    """Pick the batch tile: fewest grid steps that fit the VMEM budget."""
    per_row = 2 * (I + A) * 4                 # double-buffered x + out tiles
    fixed = 2 * (I * A + A) * 4 + (2 << 20)   # resident (double-buffered) W/bias + headroom
    tb_max = max((budget - fixed) // per_row, 8)
    tb_max = min(int(tb_max), 4096)           # diminishing returns past ~4K rows
    tb_max = max((tb_max // 8) * 8, 8)        # sublane multiple

    n_steps = pl.cdiv(B, tb_max)
    if B >= 1024:
        # v7x dual-TC: give the "parallel" batch axis at least 2 tiles.
        n_steps = max(n_steps, 2)
    if n_steps <= 1:
        return B                              # single full-batch block (always legal)
    tb = _round_up(pl.cdiv(B, n_steps), 8)    # no nearly-empty tail step
    return min(tb, tb_max)


@jax.jit
def deterministic_policy_head(inputs, weight_t, bias):
    """inputs: (B, I) f32; weight_t: (I, A) f32; bias: (A,) or (1, A) f32.

    Returns tanh(inputs @ weight_t + bias), shape (B, A) f32.
    """
    B, I = inputs.shape
    A = weight_t.shape[1]
    bias = bias.reshape(1, A)                 # accept PyTorch's (A,) layout

    budget = _vmem_budget_bytes()
    TB = _choose_batch_tile(B, I, A, budget)
    grid = (pl.cdiv(B, TB),)

    working = 2 * TB * (I + A) * 4 + 2 * (I * A + A) * 4 + (2 << 20)
    vmem_limit = int(min(max(working, 16 << 20), budget))

    cost = pl.CostEstimate(
        flops=2 * B * I * A,
        transcendentals=B * A,
        bytes_accessed=4 * (B * I + I * A + A + B * A),
    )

    return pl.pallas_call(
        _policy_head_kernel,
        out_shape=jax.ShapeDtypeStruct((B, A), jnp.float32),
        grid_spec=pltpu.PrefetchScalarGridSpec(
            num_scalar_prefetch=0,
            grid=grid,
            in_specs=[
                pl.BlockSpec((TB, I), lambda i: (i, 0)),   # x: batch-tiled
                pl.BlockSpec((I, A), lambda i: (0, 0)),    # W: VMEM-resident
                pl.BlockSpec((1, A), lambda i: (0, 0)),    # b: VMEM-resident
            ],
            out_specs=pl.BlockSpec((TB, A), lambda i: (i, 0)),
        ),
        compiler_params=pltpu.CompilerParams(
            dimension_semantics=("parallel",),   # megacore / v7x dual-TC
            vmem_limit_bytes=vmem_limit,
        ),
        cost_estimate=cost,
    )(inputs, weight_t, bias)


def _make_params(key, input_size, action_size):
    k_w, k_b = jax.random.split(key)
    bound = 1.0 / jnp.sqrt(jnp.float32(input_size))
    weight_t = jax.random.uniform(k_w, (input_size, action_size),
                                  minval=-bound, maxval=bound, dtype=jnp.float32)
    bias = jax.random.uniform(k_b, (1, action_size),
                              minval=-bound, maxval=bound, dtype=jnp.float32)
    return weight_t, bias


if __name__ == "__main__":
    key = jax.random.PRNGKey(0)

    # Case 1: tiny policy-head shapes -> single grid step, full-batch block.
    k1, k2, key = jax.random.split(key, 3)
    x = jax.random.normal(k1, (4, 32), dtype=jnp.float32)
    w_t, b = _make_params(k2, 32, 8)
    loc = deterministic_policy_head(x, w_t, b)
    jax.block_until_ready(loc)
    ref = jnp.tanh(x @ w_t + b)
    assert loc.shape == (4, 8)
    assert jnp.allclose(loc, ref, atol=1e-5, rtol=1e-5)

    # Case 2: ragged batch + PyTorch-layout (A,) bias -> still one grid step
    # (TB = 272 full-batch block, multiple of 8 sublanes, no padded tail).
    k3, k4, key = jax.random.split(key, 3)
    x2 = jax.random.normal(k3, (272, 64), dtype=jnp.float32)
    w_t2, b2 = _make_params(k4, 64, 8)
    loc2 = deterministic_policy_head(x2, w_t2, b2.reshape(-1))
    jax.block_until_ready(loc2)
    ref2 = jnp.tanh(x2 @ w_t2 + b2)
    assert loc2.shape == (272, 8)
    assert jnp.allclose(loc2, ref2, atol=1e-5, rtol=1e-5)

    # Case 3: large batch -> >= 2 batch tiles (dual-TC shardable on v7x),
    # exercises the pipelined multi-step path with a partial final block.
    k5, k6, key = jax.random.split(key, 3)
    x3 = jax.random.normal(k5, (1200, 48), dtype=jnp.float32)
    w_t3, b3 = _make_params(k6, 48, 6)
    loc3 = deterministic_policy_head(x3, w_t3, b3)
    jax.block_until_ready(loc3)
    ref3 = jnp.tanh(x3 @ w_t3 + b3)
    assert loc3.shape == (1200, 6)
    assert jnp.allclose(loc3, ref3, atol=1e-5, rtol=1e-5)

    print("KERNEL_OK")
</pallas_src>

<mosaic_0001>
module attributes {stable_mosaic.version = 11 : i64} {
  func.func @_policy_head_kernel(%arg0: i32, %arg1: memref<4x32xf32, #tpu.memory_space<vmem>>, %arg2: memref<32x8xf32, #tpu.memory_space<vmem>>, %arg3: memref<1x8xf32, #tpu.memory_space<vmem>>, %arg4: memref<4x8xf32, #tpu.memory_space<vmem>>) attributes {dimension_semantics = [#tpu.dimension_semantics<parallel>], iteration_bounds = array<i64: 1>, scalar_prefetch = 0 : i64, scratch_operands = 0 : i64, tpu.core_type = #tpu.core_type<tc>, window_params = [{transform_indices = @transform_0, window_bounds = array<i64: 4, 32>}, {pipeline_mode = #tpu.pipeline_mode<synchronous>, transform_indices = @transform_1, window_bounds = array<i64: 32, 8>}, {pipeline_mode = #tpu.pipeline_mode<synchronous>, transform_indices = @transform_2, window_bounds = array<i64: 1, 8>}, {transform_indices = @transform_3, window_bounds = array<i64: 4, 8>}]} {
    %c0 = arith.constant 0 : index
    %c0_0 = arith.constant 0 : index
    %0 = vector.load %arg1[%c0, %c0_0] : memref<4x32xf32, #tpu.memory_space<vmem>>, vector<4x32xf32>
    %c0_1 = arith.constant 0 : index
    %c0_2 = arith.constant 0 : index
    %1 = vector.load %arg2[%c0_1, %c0_2] : memref<32x8xf32, #tpu.memory_space<vmem>>, vector<32x8xf32>
    %cst = arith.constant dense<0.000000e+00> : vector<4x8xf32>
    %2 = tpu.matmul %0, %1, %cst {dimension_numbers = #tpu.dot_dimension_numbers<[1], [0], [0], [1], [0, 0, 1, 1], [], []>} : vector<4x32xf32>, vector<32x8xf32>, vector<4x8xf32> -> vector<4x8xf32>
    %c0_3 = arith.constant 0 : index
    %c0_4 = arith.constant 0 : index
    %3 = vector.load %arg3[%c0_3, %c0_4] : memref<1x8xf32, #tpu.memory_space<vmem>>, vector<1x8xf32>
    %4 = vector.broadcast %3 : vector<1x8xf32> to vector<4x8xf32>
    %5 = arith.addf %2, %4 : vector<4x8xf32>
    %6 = math.tanh %5 : vector<4x8xf32>
    %c0_5 = arith.constant 0 : index
    %c0_6 = arith.constant 0 : index
    %7 = vector.load %arg4[%c0_5, %c0_6] : memref<4x8xf32, #tpu.memory_space<vmem>>, vector<4x8xf32>
    tpu.vector_store %arg4[%c0_5, %c0_6], %6 {strides = array<i32>} : memref<4x8xf32, #tpu.memory_space<vmem>>, vector<4x8xf32>,
    return
  }
  func.func @transform_0(%arg0: i32) -> (i32, i32) {
    %c0_i32 = arith.constant 0 : i32
    %c0_i32_0 = arith.constant 0 : i32
    return %arg0, %c0_i32 : i32, i32
  }
  func.func @transform_1(%arg0: i32) -> (i32, i32) {
    %c0_i32 = arith.constant 0 : i32
    %c0_i32_0 = arith.constant 0 : i32
    %c0_i32_1 = arith.constant 0 : i32
    return %c0_i32, %c0_i32_0 : i32, i32
  }
  func.func @transform_2(%arg0: i32) -> (i32, i32) {
    %c0_i32 = arith.constant 0 : i32
    %c0_i32_0 = arith.constant 0 : i32
    %c0_i32_1 = arith.constant 0 : i32
    return %c0_i32, %c0_i32_0 : i32, i32
  }
  func.func @transform_3(%arg0: i32) -> (i32, i32) {
    %c0_i32 = arith.constant 0 : i32
    %c0_i32_0 = arith.constant 0 : i32
    return %arg0, %c0_i32 : i32, i32
  }
}

</mosaic_0001>

<llo_original>
// kernel: deterministic_policy_head.1
$region0: #{deterministic_policy_head.1}
  #allocation0 [shape = 'u32[]', space=smem, size = 0x4, offset = 0x4, fixed_abs, tag = 'smem constant byte address 0x4 - core index']
  #allocation1 [shape = 'u32[72,128]{1,0:T(1,128)}', space=vmem, size = 0x9000, scoped, tag = 'internal scratch']
  %s0 = inlined_call_operand.vmem [shape: f32[4,32], index: 0, kind: input, shape index: {}]
  %s1 = inlined_call_operand.vmem [shape: f32[32,8], index: 1, kind: input, shape index: {}]
  %s2 = inlined_call_operand.vmem [shape: f32[1,8], index: 2, kind: input, shape index: {}]
  %s3 = inlined_call_operand.hbm [shape: f32[4,8], index: 3, kind: output, shape index: {}]
  %s4 = sld [smem:[#allocation0]]
  $region22: #{deterministic_policy_head.1} parent=0
    _
  %s6 = ssub.s32 1, %s4
  %s7 = scalar_select 0, %s6, %s4
  $region1: #{deterministic_policy_head.1} parent=0
    #allocation2 [shape = 'u8[2048]{0}', space=vmem, size = 0x800, scoped, tag = 'output window, operand 0, single buffered']
    #allocation3 [shape = 's32[1]{0}', space=sflag, size = 0x4, scoped, tag = 'scoped memory for deterministic_policy_head.1']
    %8 = vsyncpa [#allocation3], 0
    // Predicated region
    $region2: #{deterministic_policy_head.1} parent=1 // pred_check
      _
    $region3: #{deterministic_policy_head.1} parent=1 // pred_check_branch
      %10 = sbr.rel (0) target = $region5
    $region4: #{deterministic_policy_head.1} parent=1 // pred_region
      _
    $region5: #{deterministic_policy_head.1} parent=1 // pred_fallthru
      _
    // Predicated region
    $region6: #{deterministic_policy_head.1} parent=1 // pred_check
      _
    $region7: #{deterministic_policy_head.1} parent=1 // pred_check_branch
      %12 = sbr.rel (0) target = $region9
    $region8: #{deterministic_policy_head.1} parent=1 // pred_region
      _
    $region9: #{deterministic_policy_head.1} parent=1 // pred_fallthru
      _
    // Predicated region
    $region10: #{deterministic_policy_head.1} parent=1 // pred_check
      _
    $region11: #{deterministic_policy_head.1} parent=1 // pred_check_branch
      %14 = sbr.rel (0) target = $region13
    $region12: #{deterministic_policy_head.1} parent=1 // pred_region
      _
    $region13: #{deterministic_policy_head.1} parent=1 // pred_fallthru
      _
    %v15 = vld [vmem:[%s0] sm:$0xf]
    %v16 = vld [vmem:[%s1] sm:$0xff]
    %v17 = vld [vmem:[%s1 + $0x8] sm:$0xff]
    %v18 = vld [vmem:[%s1 + $0x10] sm:$0xff]
    %v19 = vld [vmem:[%s1 + $0x18] sm:$0xff]
    %v20 = vld [vmem:[%s2] sm:$0x1]
    %v22 = vperm.slane %v20, 0
    %vm24 = vcmask 261120
    %v26 = vsel %vm24, %v15, 0
    %28 = vmatpush.msra.mxu0 0.0
    %29 = vmatpush.msra.mxu0 0.0
    %30 = vmatpush.msra.mxu0 0.0
    %31 = vmatpush.msra.mxu0 0.0
    %32 = vmatpush.msra.mxu0 0.0
    %33 = vmatpush.msra.mxu0 0.0
    %34 = vmatpush.msra.mxu0 0.0
    %35 = vmatpush.msra.mxu0 0.0
    %36 = vmatpush.msra.mxu0 0.0
    %37 = vmatpush.msra.mxu0 0.0
    %38 = vmatpush.msra.mxu0 0.0
    %39 = vmatpush.msra.mxu0 0.0
    %40 = vmatpush.msra.mxu0 %v19
    %41 = vmatpush.msra.mxu0 %v18
    %42 = vmatpush.msra.mxu0 %v17
    %43 = vmatpush.msra.mxu0 %v16
    %44 = vmatmul.f32.gmra.mxu0 %v26
    %v45 = vpop.f32.mrf.mxu0
    %v46 = vadd.f32 %v22, %v45
    %47 = vdwg.mxu0
    %v48 = vtanh.pop %v46
    %vm49 = vcmask 60416
    %50 = vst.msk [vmem:[#allocation2] sm:$0xf] %vm49, %v48
    // Predicated region
    $region14: #{deterministic_policy_head.1} parent=1 // pred_check
      _
    $region15: #{deterministic_policy_head.1} parent=1 // pred_check_branch
      %52 = sbr.rel (0) target = $region17
    $region16: #{deterministic_policy_head.1} parent=1 // pred_region
      %54 = vsyncadd [#allocation3], 0
      %s56 = sshll.u32 [#allocation2], 4
      %s57 = int_to_ptr.vmem [resolvable:$true] %s56
      %s58 = sshll.u32 %s3, 4
      %s59 = int_to_ptr.hbm [resolvable:$true] %s58
      %61 = dma.vmem_to_hbm [thread:$0]  %s57, 64, %s59, [#allocation3]
    $region17: #{deterministic_policy_head.1} parent=1 // pred_fallthru
      _
    // Predicated region
    $region18: #{deterministic_policy_head.1} parent=1 // pred_check
      _
    $region19: #{deterministic_policy_head.1} parent=1 // pred_check_branch
      %63 = sbr.rel (0) target = $region21
    $region20: #{deterministic_policy_head.1} parent=1 // pred_region
      %65 = dma.done [#allocation3], 64
    $region21: #{deterministic_policy_head.1} parent=1 // pred_fallthru
      _
    %66 = vsyncpa [#allocation3], 1

</llo_original>
